<compile_context>
chip_gen: v7x
topology: tpu7x:2x2x1
jax: 0.10.0
libtpu: 0.0.40
codegen_flags: <defaults>
</compile_context>

<pallas_src>
import functools

import jax
import jax.numpy as jnp
from jax.experimental import pallas as pl
from jax.experimental.pallas import tpu as pltpu

_KH = 5
_KW = 5
_PAD = 2


def _im2col_conv(x_ref, w_ref, h_idx, *, block_h, W, kwc):
    """Conv for one row-tile: gather the 5 kh taps from the (rows, W, KW*Cin) strip and
    run ONE bf16 MXU matmul (M = block_h*W, K = KH*KW*Cin, N = Cout_p). Returns f32."""
    h0 = pl.multiple_of(h_idx * block_h, block_h)
    xw = x_ref[pl.ds(h0, block_h + _KH - 1), :, :]           # (block_h+4, W, KW*Cin) bf16
    taps = [xw[kh:kh + block_h] for kh in range(_KH)]        # cheap leading-dim slices
    patch = jnp.concatenate(taps, axis=-1)                   # (block_h, W, KH*KW*Cin)
    patch = patch.reshape(block_h * W, _KH * kwc)
    return jnp.dot(patch, w_ref[...], preferred_element_type=jnp.float32)


def _conv_stats_kernel(x_ref, w_ref, stats_ref, *, block_h, W, kwc, rows_valid_last):
    """Pass 1: recompute conv for this tile, emit per-tile partial (sum, sumsq)."""
    h_idx = pl.program_id(1)
    conv = _im2col_conv(x_ref, w_ref, h_idx, block_h=block_h, W=W, kwc=kwc)

    if rows_valid_last != block_h:
        # H was padded to a multiple of block_h: zero the padded rows of the LAST tile
        # so they do not contaminate the batch statistics (static specialization).
        n_valid = jnp.where(h_idx == pl.num_programs(1) - 1, rows_valid_last, block_h)
        row = jax.lax.broadcasted_iota(jnp.int32, (block_h * W, 1), 0) // W
        conv = jnp.where(row < n_valid, conv, 0.0)

    # NOTE: E[x^2]-E[x]^2 in f32 can cancel for very large N*H*W; the clamp in the
    # wrapper hides it.  Welford-style merging would be more robust if needed.
    stats_ref[...] = jnp.concatenate(
        [jnp.sum(conv, axis=0, keepdims=True),
         jnp.sum(conv * conv, axis=0, keepdims=True)], axis=0)


def _conv_bn_lrelu_kernel(x_ref, w_ref, affine_ref, out_ref, *,
                          block_h, W, kwc, cout, neg_slope):
    """Pass 2: recompute conv, y = conv*scale + shift, LeakyReLU, store real Cout only."""
    h_idx = pl.program_id(1)
    conv = _im2col_conv(x_ref, w_ref, h_idx, block_h=block_h, W=W, kwc=kwc)
    aff = affine_ref[...]                                    # (2, Cout_p) f32
    scale = aff[0:1, :]
    shift = aff[1:2, :]
    y = conv * scale + shift
    y = jnp.where(y >= 0.0, y, neg_slope * y)
    out_ref[...] = y[:, :cout].reshape(block_h, W, cout).astype(out_ref.dtype)


def unet2d_gan_init_conv(x_nchw, weight_oihw, bias, gamma, beta,
                         eps=1e-5, neg_slope=0.2, block_h=64):
    """Matches UNet2D_GAN_InitConv.forward for a module in train() mode.

    x_nchw:      (N, Cin, H, W)     float32
    weight_oihw: (Cout, Cin, 5, 5)  float32
    bias, gamma, beta: (Cout,)      float32  (conv bias is a no-op under train-mode BN)
    returns:     (N, Cout, H, W)    float32
    """
    del bias  # cancelled exactly by the training-mode BatchNorm mean subtraction
    N, Cin, H, W = x_nchw.shape
    Cout = weight_oihw.shape[0]
    Cout_p = max(128, pl.cdiv(Cout, 128) * 128)              # lane-dense matmul N dim
    kwc = _KW * Cin

    # Fixed block_h + H padding (no divisor search).
    block_h = int(min(block_h, H))
    num_h = pl.cdiv(H, block_h)
    H_pad = num_h * block_h
    rows_valid_last = H - (num_h - 1) * block_h

    # ---- wrapper-side layout glue (tiny tensors: Cin / KW*Cin channels) -----------
    x_nhwc = jnp.transpose(x_nchw, (0, 2, 3, 1))
    x_sp = jnp.pad(x_nhwc, ((0, 0), (_PAD, _PAD + H_pad - H), (_PAD, _PAD), (0, 0)))
    # kw-tap expansion hoisted out of the kernel: (N, H_pad+4, W, KW*Cin), bf16.
    x_kw = jnp.concatenate([x_sp[:, :, kw:kw + W, :] for kw in range(_KW)], axis=-1)
    x_kw = x_kw.astype(jnp.bfloat16)

    # (KH, KW, Cin, Cout) -> (KH*KW*Cin, Cout_p), kh-major / kw / cin-minor (matches patch)
    w_mat = jnp.transpose(weight_oihw, (2, 3, 1, 0)).reshape(_KH * kwc, Cout)
    w_mat = jnp.pad(w_mat, ((0, 0), (0, Cout_p - Cout))).astype(jnp.bfloat16)

    cparams = pltpu.CompilerParams(
        dimension_semantics=("parallel", "parallel"),
        vmem_limit_bytes=64 * 1024 * 1024)

    x_spec = pl.BlockSpec((None, H_pad + 2 * _PAD, W, kwc), lambda n, h: (n, 0, 0, 0))
    w_spec = pl.BlockSpec((_KH * kwc, Cout_p), lambda n, h: (0, 0))

    # ---- pass 1: conv (recomputed, never stored) -> per-tile partial stats --------
    stats = pl.pallas_call(
        functools.partial(_conv_stats_kernel, block_h=block_h, W=W, kwc=kwc,
                          rows_valid_last=rows_valid_last),
        grid=(N, num_h),
        in_specs=[x_spec, w_spec],
        out_specs=pl.BlockSpec((None, None, 2, Cout_p), lambda n, h: (n, h, 0, 0)),
        out_shape=jax.ShapeDtypeStruct((N, num_h, 2, Cout_p), jnp.float32),
        compiler_params=cparams,
    )(x_kw, w_mat)

    # ---- tiny global reduction + BN affine folding (plain JAX) --------------------
    total = jnp.sum(stats, axis=(0, 1))                      # (2, Cout_p)
    cnt = jnp.float32(N * H * W)                             # real pixel count
    mean = total[0] / cnt
    var = jnp.maximum(total[1] / cnt - mean * mean, 0.0)     # biased variance
    inv = jax.lax.rsqrt(var + jnp.float32(eps))
    gamma_p = jnp.pad(gamma.astype(jnp.float32), (0, Cout_p - Cout), constant_values=1.0)
    beta_p = jnp.pad(beta.astype(jnp.float32), (0, Cout_p - Cout))
    scale = gamma_p * inv
    shift = beta_p - mean * scale
    affine = jnp.stack([scale, shift], axis=0)               # (2, Cout_p)

    # ---- pass 2: recompute conv, BN affine + LeakyReLU, store real Cout channels ---
    out_nhwc = pl.pallas_call(
        functools.partial(_conv_bn_lrelu_kernel, block_h=block_h, W=W, kwc=kwc,
                          cout=Cout, neg_slope=float(neg_slope)),
        grid=(N, num_h),
        in_specs=[x_spec, w_spec, pl.BlockSpec((2, Cout_p), lambda n, h: (0, 0))],
        out_specs=pl.BlockSpec((None, block_h, W, Cout), lambda n, h: (n, h, 0, 0)),
        out_shape=jax.ShapeDtypeStruct((N, H_pad, W, Cout), jnp.float32),
        compiler_params=cparams,
    )(x_kw, w_mat, affine)

    # TODO(synk): fold this transpose + H crop into pass 2's output BlockSpec.
    return jnp.transpose(out_nhwc[:, :H], (0, 3, 1, 2))


def _reference(x_nchw, weight_oihw, bias, gamma, beta, eps=1e-5, neg_slope=0.2):
    """Pure-JAX f32 reference with the full module math (including conv bias)."""
    x_nhwc = jnp.transpose(x_nchw, (0, 2, 3, 1))
    w_hwio = jnp.transpose(weight_oihw, (2, 3, 1, 0))
    conv = jax.lax.conv_general_dilated(
        x_nhwc, w_hwio, window_strides=(1, 1), padding=((2, 2), (2, 2)),
        dimension_numbers=('NHWC', 'HWIO', 'NHWC')) + bias.reshape(1, 1, 1, -1)
    mean = jnp.mean(conv, axis=(0, 1, 2), keepdims=True)
    var = jnp.var(conv, axis=(0, 1, 2), keepdims=True)
    y = (conv - mean) * jax.lax.rsqrt(var + eps)
    y = y * gamma.reshape(1, 1, 1, -1) + beta.reshape(1, 1, 1, -1)
    y = jnp.where(y >= 0, y, neg_slope * y)
    return jnp.transpose(y, (0, 3, 1, 2))


if __name__ == "__main__":
    N, Cin, Cout, H, W = 2, 4, 8, 16, 16

    key = jax.random.PRNGKey(0)
    kx, kw_, kb, kg, kbeta = jax.random.split(key, 5)

    x = jax.random.normal(kx, (N, Cin, H, W), dtype=jnp.float32)
    weight = 0.1 * jax.random.normal(kw_, (Cout, Cin, 5, 5), dtype=jnp.float32)
    bias = 0.05 * jax.random.normal(kb, (Cout,), dtype=jnp.float32)
    gamma = 1.0 + 0.1 * jax.random.normal(kg, (Cout,), dtype=jnp.float32)
    beta = 0.05 * jax.random.normal(kbeta, (Cout,), dtype=jnp.float32)

    ref = jax.block_until_ready(_reference(x, weight, bias, gamma, beta))

    # Tolerance relaxed vs f32 (review item: bf16 MXU inputs; BN re-normalizes so the
    # relative error stays at bf16 level).
    tol = 3e-2

    # block_h=8 -> 2 row-tiles per image (H divisible: no padded rows).
    out = jax.block_until_ready(
        unet2d_gan_init_conv(x, weight, bias, gamma, beta, block_h=8))
    assert out.shape == (N, Cout, H, W)
    err = float(jnp.max(jnp.abs(out - ref)))
    assert err < tol, f"max abs err (block_h=8) = {err}"

    # block_h=6 -> H padded to 18, exercises the padded-row masking in the stats pass.
    out2 = jax.block_until_ready(
        unet2d_gan_init_conv(x, weight, bias, gamma, beta, block_h=6))
    err2 = float(jnp.max(jnp.abs(out2 - ref)))
    assert err2 < tol, f"max abs err (block_h=6) = {err2}"

    print("KERNEL_OK")
</pallas_src>

<mosaic_0001>
module attributes {stable_mosaic.version = 11 : i64} {
  func.func @_conv_stats_kernel(%arg0: i32, %arg1: i32, %arg2: memref<1x20x16x20xbf16, #tpu.memory_space<vmem>>, %arg3: memref<100x128xbf16, #tpu.memory_space<vmem>>, %arg4: memref<1x1x2x128xf32, #tpu.memory_space<vmem>>) attributes {dimension_semantics = [#tpu.dimension_semantics<parallel>, #tpu.dimension_semantics<parallel>], iteration_bounds = array<i64: 2, 2>, scalar_prefetch = 0 : i64, scratch_operands = 0 : i64, tpu.core_type = #tpu.core_type<tc>, window_params = [{transform_indices = @transform_0, window_bounds = array<i64: 1, 20, 16, 20>}, {pipeline_mode = #tpu.pipeline_mode<synchronous>, transform_indices = @transform_1, window_bounds = array<i64: 100, 128>}, {transform_indices = @transform_2, window_bounds = array<i64: 1, 1, 2, 128>}]} {
    %c8_i32 = arith.constant 8 : i32
    %0 = arith.muli %arg1, %c8_i32 : i32
    %1 = tpu.assume_multiple %0, 8 : i32
    %c0 = arith.constant 0 : index
    %2 = arith.index_cast %1 : i32 to index
    %c0_0 = arith.constant 0 : index
    %c0_1 = arith.constant 0 : index
    %3 = vector.load %arg2[%c0, %2, %c0_0, %c0_1] : memref<1x20x16x20xbf16, #tpu.memory_space<vmem>>, vector<1x12x16x20xbf16>
    %4 = vector.shape_cast %3 : vector<1x12x16x20xbf16> to vector<12x16x20xbf16>
    %5 = vector.extract_strided_slice %4 {offsets = [0, 0, 0], sizes = [8, 16, 20], strides = [1, 1, 1]} : vector<12x16x20xbf16> to vector<8x16x20xbf16>
    %6 = vector.extract_strided_slice %4 {offsets = [1, 0, 0], sizes = [8, 16, 20], strides = [1, 1, 1]} : vector<12x16x20xbf16> to vector<8x16x20xbf16>
    %7 = vector.extract_strided_slice %4 {offsets = [2, 0, 0], sizes = [8, 16, 20], strides = [1, 1, 1]} : vector<12x16x20xbf16> to vector<8x16x20xbf16>
    %8 = vector.extract_strided_slice %4 {offsets = [3, 0, 0], sizes = [8, 16, 20], strides = [1, 1, 1]} : vector<12x16x20xbf16> to vector<8x16x20xbf16>
    %9 = vector.extract_strided_slice %4 {offsets = [4, 0, 0], sizes = [8, 16, 20], strides = [1, 1, 1]} : vector<12x16x20xbf16> to vector<8x16x20xbf16>
    %10 = tpu.concatenate %5, %6, %7, %8, %9 in 2 : vector<8x16x20xbf16>, vector<8x16x20xbf16>, vector<8x16x20xbf16>, vector<8x16x20xbf16>, vector<8x16x20xbf16> -> vector<8x16x100xbf16>
    %11 = vector.shape_cast %10 : vector<8x16x100xbf16> to vector<128x100xbf16>
    %c0_2 = arith.constant 0 : index
    %c0_3 = arith.constant 0 : index
    %12 = vector.load %arg3[%c0_2, %c0_3] : memref<100x128xbf16, #tpu.memory_space<vmem>>, vector<100x128xbf16>
    %cst = arith.constant dense<0.000000e+00> : vector<128x128xf32>
    %13 = tpu.matmul %11, %12, %cst {dimension_numbers = #tpu.dot_dimension_numbers<[1], [0], [0], [1], [0, 0, 1, 1], [], []>} : vector<128x100xbf16>, vector<100x128xbf16>, vector<128x128xf32> -> vector<128x128xf32>
    %cst_4 = arith.constant dense<0.000000e+00> : vector<128xf32>
    %14 = vector.multi_reduction <add>, %13, %cst_4 [0] : vector<128x128xf32> to vector<128xf32>
    %15 = vector.shape_cast %14 : vector<128xf32> to vector<1x128xf32>
    %16 = arith.mulf %13, %13 : vector<128x128xf32>
    %cst_5 = arith.constant dense<0.000000e+00> : vector<128xf32>
    %17 = vector.multi_reduction <add>, %16, %cst_5 [0] : vector<128x128xf32> to vector<128xf32>
    %18 = vector.shape_cast %17 : vector<128xf32> to vector<1x128xf32>
    %19 = tpu.concatenate %15, %18 in 0 : vector<1x128xf32>, vector<1x128xf32> -> vector<2x128xf32>
    %c0_6 = arith.constant 0 : index
    %c0_7 = arith.constant 0 : index
    %c0_8 = arith.constant 0 : index
    %c0_9 = arith.constant 0 : index
    %20 = vector.load %arg4[%c0_6, %c0_7, %c0_8, %c0_9] : memref<1x1x2x128xf32, #tpu.memory_space<vmem>>, vector<1x1x2x128xf32>
    %21 = vector.shape_cast %20 : vector<1x1x2x128xf32> to vector<2x128xf32>
    %22 = vector.shape_cast %19 : vector<2x128xf32> to vector<1x1x2x128xf32>
    tpu.vector_store %arg4[%c0_6, %c0_7, %c0_8, %c0_9], %22 {strides = array<i32>} : memref<1x1x2x128xf32, #tpu.memory_space<vmem>>, vector<1x1x2x128xf32>,
    return
  }
  func.func @transform_0(%arg0: i32, %arg1: i32) -> (i32, i32, i32, i32) {
    %c0_i32 = arith.constant 0 : i32
    %c0_i32_0 = arith.constant 0 : i32
    %c0_i32_1 = arith.constant 0 : i32
    %c0_i32_2 = arith.constant 0 : i32
    return %arg0, %c0_i32, %c0_i32_0, %c0_i32_1 : i32, i32, i32, i32
  }
  func.func @transform_1(%arg0: i32, %arg1: i32) -> (i32, i32) {
    %c0_i32 = arith.constant 0 : i32
    %c0_i32_0 = arith.constant 0 : i32
    %c0_i32_1 = arith.constant 0 : i32
    return %c0_i32, %c0_i32_0 : i32, i32
  }
  func.func @transform_2(%arg0: i32, %arg1: i32) -> (i32, i32, i32, i32) {
    %c0_i32 = arith.constant 0 : i32
    %c0_i32_0 = arith.constant 0 : i32
    %c0_i32_1 = arith.constant 0 : i32
    return %arg0, %arg1, %c0_i32, %c0_i32_0 : i32, i32, i32, i32
  }
}

</mosaic_0001>

<llo_original>
// kernel: tpu_custom_call.1
$region0: #{tpu_custom_call.1}
  #allocation0 [shape = 'u32[]', space=smem, size = 0x4, offset = 0x4, fixed_abs, tag = 'smem constant byte address 0x4 - core index']
  #allocation1 [shape = 'u32[144,128]{1,0:T(1,128)}', space=vmem, size = 0x12000, scoped, tag = 'internal scratch']
  %s0 = inlined_call_operand.hbm [shape: bf16[2,20,16,20], index: 0, kind: input, shape index: {}]
  %s1 = inlined_call_operand.hbm [shape: bf16[100,128], index: 1, kind: input, shape index: {}]
  %s2 = inlined_call_operand.hbm [shape: f32[2,2,2,128], index: 2, kind: output, shape index: {}]
  %s3 = sld [smem:[#allocation0]]
  $region49: #{tpu_custom_call.1} parent=0
    _
  %s5 = ssub.s32 1, %s3
  %s6 = scalar_select 0, %s5, %s3
  $region1: #{tpu_custom_call.1} parent=0
    #allocation2 [shape = 'u8[163840]{0}', space=vmem, size = 0x28000, scoped, tag = 'input window, operand 0']
    #allocation3 [shape = 's32[2]{0}', space=sflag, size = 0x8, scoped, tag = 'scoped memory for tpu_custom_call.1']
    #allocation4 [shape = 's32[2]{0}', space=sflag, size = 0x8, scoped, tag = 'scoped memory for tpu_custom_call.1']
    #allocation5 [shape = 'u8[26624]{0}', space=vmem, size = 0x6800, scoped, tag = 'input window, operand 1, single buffered']
    #allocation6 [shape = 's32[1]{0}', space=sflag, size = 0x4, scoped, tag = 'scoped memory for tpu_custom_call.1']
    #allocation7 [shape = 'u8[2048]{0}', space=vmem, size = 0x800, scoped, tag = 'output window, operand 0']
    %7 = vsyncpa [#allocation3], 0
    %s8 = scalar_lea.sflag [#allocation3], 1
    %9 = vsyncpa %s8, 0
    %10 = vsyncpa [#allocation6], 0
    %11 = vsyncpa [#allocation4], 0
    %s12 = scalar_lea.sflag [#allocation4], 1
    %13 = vsyncpa %s12, 0
    loop: start=0, step=1, limit=6
    $region2: #{tpu_custom_call.1} parent=1 // loop_pre_header
      _
    $region3: #{tpu_custom_call.1} parent=1 // loop_header
      %s15 = sphi 0, %s19
      %p16 = scmp.ge.s32.totalorder %s15, 6
      %s22 = sphi 0, %s34
      %s23 = sphi 0, %s30
      %s24 = sphi 0, %s22
      %s25 = sphi 0, %s23
      %s26 = sphi 0, %s24
      %s27 = sphi 0, %s25
      %s37 = sphi 0, %s39
      %s40 = sphi 0, %s37
      %s41 = sphi 0, %s40
      %s57 = sphi 0, %s41
      %s61 = sphi 0, %s61
      %s63 = sphi 0, %s61
      %s64 = sphi 0, %s63
      %s78 = sphi 0, %s64
      %s86 = sphi 0, %s88
      %s89 = sphi 0, %s86
      %s90 = sphi 0, %s89
      %s106 = sphi 0, %s90
    $region4: #{tpu_custom_call.1} parent=1 // loop_header_branch
      %18 = sbr.rel (%p16) target = $region8
    $region5: #{tpu_custom_call.1} parent=1 // loop_body
      %s20 = ssub.s32 %s15, 1
      %s21 = ssub.s32 %s15, 2
      %s28 = sadd.s32 1, %s23
      %p29 = scmp.ge.s32.totalorder %s28, 2
      %s30 = scalar_select %p29, 0, %s28
      %s31 = sadd.s32 1, %s22
      %s32 = scalar_select %p29, %s31, %s22
      %p33 = scmp.ge.s32.totalorder %s32, 2
      %s34 = scalar_select %p33, 0, %s32
      %s35 = ssub.s32 %s22, %s34
      %p36 = scmp.eq.s32.totalorder %s35, 0
      %s38 = sadd.s32 %s37, 1
      %s39 = scalar_select %p36, %s37, %s38
      %p42 = pneg %p36
      %p43 = scmp.eq.s32.totalorder %s15, 3
      %p44 = por %p42, %p43
      %p45 = scmp.ne.s32.totalorder %s37, %s40
      %p46 = scmp.eq.s32.totalorder %s15, 0
      %p47 = por %p45, %p46
      %p48 = scmp.ne.s32.totalorder %s37, %s40
      %p49 = scmp.eq.s32.totalorder %s20, 3
      %p50 = por %p48, %p49
      %p51 = scmp.ne.s32.totalorder %s40, %s41
      %p52 = scmp.eq.s32.totalorder %s20, 0
      %p53 = por %p51, %p52
      %p54 = scmp.ne.s32.totalorder %s40, %s41
      %p55 = scmp.eq.s32.totalorder %s21, 3
      %p56 = por %p54, %p55
      %p58 = scmp.ne.s32.totalorder %s41, %s57
      %p59 = scmp.eq.s32.totalorder %s21, 0
      %p60 = por %p58, %p59
      %s62 = sadd.s32 %s61, 1
      %p65 = scmp.eq.s32.totalorder %s15, 3
      %p66 = scmp.ne.s32.totalorder %s61, %s63
      %p67 = scmp.eq.s32.totalorder %s15, 0
      %p68 = por %p66, %p67
      %p69 = scmp.ne.s32.totalorder %s61, %s63
      %p70 = scmp.eq.s32.totalorder %s20, 3
      %p71 = por %p69, %p70
      %p72 = scmp.ne.s32.totalorder %s63, %s64
      %p73 = scmp.eq.s32.totalorder %s20, 0
      %p74 = por %p72, %p73
      %p75 = scmp.ne.s32.totalorder %s63, %s64
      %p76 = scmp.eq.s32.totalorder %s21, 3
      %p77 = por %p75, %p76
      %p79 = scmp.ne.s32.totalorder %s64, %s78
      %p80 = scmp.eq.s32.totalorder %s21, 0
      %p81 = por %p79, %p80
      %s82 = ssub.s32 %s22, %s34
      %s83 = ssub.s32 %s23, %s30
      %s84 = sor.u32 %s82, %s83
      %p85 = scmp.eq.s32.totalorder %s84, 0
      %s87 = sadd.s32 %s86, 1
      %s88 = scalar_select %p85, %s86, %s87
      %p91 = pneg %p85
      %p92 = scmp.eq.s32.totalorder %s15, 3
      %p93 = por %p91, %p92
      %p94 = scmp.ne.s32.totalorder %s86, %s89
      %p95 = scmp.eq.s32.totalorder %s15, 0
      %p96 = por %p94, %p95
      %p97 = scmp.ne.s32.totalorder %s86, %s89
      %p98 = scmp.eq.s32.totalorder %s20, 3
      %p99 = por %p97, %p98
      %p100 = scmp.ne.s32.totalorder %s89, %s90
      %p101 = scmp.eq.s32.totalorder %s20, 0
      %p102 = por %p100, %p101
      %p103 = scmp.ne.s32.totalorder %s89, %s90
      %p104 = scmp.eq.s32.totalorder %s21, 3
      %p105 = por %p103, %p104
      %p107 = scmp.ne.s32.totalorder %s90, %s106
      %p108 = scmp.eq.s32.totalorder %s21, 0
      %p109 = por %p107, %p108
      %p110 = scmp.le.s32.totalorder 1, %s15
      %p111 = scmp.lt.s32.totalorder %s15, 5
      %p112 = pnand %p110, %p111
      %p113 = pneg %p112
      // Predicated region
      $region9: #{tpu_custom_call.1} parent=5 // pred_check
        _
      $region10: #{tpu_custom_call.1} parent=5 // pred_check_branch
        %115 = sbr.rel (%p112) target = $region12
      $region11: #{tpu_custom_call.1} parent=5 // pred_region
        %s116 = ssub.s32 %s15, 1
        // Predicated region
        $region13: #{tpu_custom_call.1} parent=11 // pred_check
          %p117 = pneg %p74
        $region14: #{tpu_custom_call.1} parent=11 // pred_check_branch
          %119 = sbr.rel (%p117) target = $region16
        $region15: #{tpu_custom_call.1} parent=11 // pred_region
          %s121 = ssub.s32 832, 832
          %122 = vsyncadd [#allocation6], %s121
          %s123 = sshll.u32 [#allocation5], 4
          %s124 = int_to_ptr.vmem [resolvable:$true] %s123
          %129 = dma.hbm_to_vmem [thread:$0]  %s1, 832, %s124, [#allocation6], 64, 64, 4
        $region16: #{tpu_custom_call.1} parent=11 // pred_fallthru
          _
      $region12: #{tpu_custom_call.1} parent=5 // pred_fallthru
        _
      %p130 = scmp.lt.s32.totalorder %s15, 4
      // Predicated region
      $region17: #{tpu_custom_call.1} parent=5 // pred_check
        %p131 = pneg %p130
      $region18: #{tpu_custom_call.1} parent=5 // pred_check_branch
        %133 = sbr.rel (%p131) target = $region20
      $region19: #{tpu_custom_call.1} parent=5 // pred_region
        // Predicated region
        $region21: #{tpu_custom_call.1} parent=19 // pred_check
          %p134 = pneg %p47
        $region22: #{tpu_custom_call.1} parent=19 // pred_check_branch
          %136 = sbr.rel (%p134) target = $region24
        $region23: #{tpu_custom_call.1} parent=19 // pred_region
          %s137 = sand.u32 %s37, 1
          %s138 = scalar_lea.sflag [#allocation3], %s137
          %s139 = sand.u32 %s37, 1
          %s140 = smul.addr %s139, 160
          %s141 = scalar_lea.vmem [#allocation2], %s140
          %s143 = ssub.s32 2560, 2560
          %144 = vsyncadd %s138, %s143
          %s145 = smul.addr %s22, 40
          %s146 = smul.addr %s145, 64
          %s147 = scalar_lea.hbm %s0, %s146
          %s148 = sshll.u32 %s141, 4
          %s149 = int_to_ptr.vmem [resolvable:$true] %s148
          %154 = dma.hbm_to_vmem [thread:$0]  %s147, 2560, %s149, %s138, 64, 64, 4
        $region24: #{tpu_custom_call.1} parent=19 // pred_fallthru
          _
      $region20: #{tpu_custom_call.1} parent=5 // pred_fallthru
        _
      %p155 = scmp.le.s32.totalorder 1, %s15
      %p156 = scmp.lt.s32.totalorder %s15, 5
      %p157 = pnand %p155, %p156
      %p158 = pneg %p157
      // Predicated region
      $region25: #{tpu_custom_call.1} parent=5 // pred_check
        _
      $region26: #{tpu_custom_call.1} parent=5 // pred_check_branch
        %160 = sbr.rel (%p157) target = $region28
      $region27: #{tpu_custom_call.1} parent=5 // pred_region
        %s161 = ssub.s32 %s15, 1
        %s162 = sand.u32 %s40, 1
        %s163 = scalar_lea.sflag [#allocation3], %s162
        %s164 = sand.u32 %s40, 1
        %s165 = smul.addr %s164, 160
        %s166 = scalar_lea.vmem [#allocation2], %s165
        // Predicated region
        $region29: #{tpu_custom_call.1} parent=27 // pred_check
          %p167 = pneg %p53
        $region30: #{tpu_custom_call.1} parent=27 // pred_check_branch
          %169 = sbr.rel (%p167) target = $region32
        $region31: #{tpu_custom_call.1} parent=27 // pred_region
          %170 = dma.done %s163, 2560
        $region32: #{tpu_custom_call.1} parent=27 // pred_fallthru
          _
        // Predicated region
        $region33: #{tpu_custom_call.1} parent=27 // pred_check
          %p171 = pneg %p74
        $region34: #{tpu_custom_call.1} parent=27 // pred_check_branch
          %173 = sbr.rel (%p171) target = $region36
        $region35: #{tpu_custom_call.1} parent=27 // pred_region
          %174 = dma.done [#allocation6], 832
        $region36: #{tpu_custom_call.1} parent=27 // pred_fallthru
          _
        %s175 = sand.u32 %s40, 1
        %s176 = scalar_lea.sflag [#allocation3], %s175
        %s177 = sand.u32 %s40, 1
        %s178 = smul.addr %s177, 160
        %s179 = scalar_lea.vmem [#allocation2], %s178
        %p180 = pneg %p53
        %p181 = pneg %p50
        %p182 = pneg %p74
        %p183 = pneg %p71
        %p184 = pneg %p102
        %p185 = pneg %p99
        %s186 = sand.u32 %s89, 1
        %s187 = scalar_lea.sflag [#allocation4], %s186
        %s188 = sand.u32 %s89, 1
        %s189 = smul.addr %s188, 2
        %s190 = scalar_lea.vmem [#allocation7], %s189
        %s192 = smul.u32 %s25, 8
        %s193 = smul.u32 %s192, 2
        %s194 = smul.addr %s193, 4
        %s195 = scalar_lea.vmem %s166, %s194 [#allocation2]
        %v196 = vld [vmem:[%s195] sm:$0xf]
        %v197 = vld [vmem:[%s195 + $0x4] sm:$0xf]
        %v198 = vld [vmem:[%s195 + $0x8] sm:$0xf]
        %v199 = vld [vmem:[%s195 + $0xc] sm:$0xf]
        %v200 = vld [vmem:[%s195 + $0x10] sm:$0xf]
        %v201 = vld [vmem:[%s195 + $0x14] sm:$0xf]
        %v202 = vld [vmem:[%s195 + $0x18] sm:$0xf]
        %v203 = vld [vmem:[%s195 + $0x1c] sm:$0xf]
        %v204 = vld [vmem:[%s195 + $0x20] sm:$0xf]
        %v205 = vld [vmem:[%s195 + $0x24] sm:$0xf]
        %v206 = vld [vmem:[%s195 + $0x28] sm:$0xf]
        %v207 = vld [vmem:[%s195 + $0x2c] sm:$0xf]
        %v208 = vld [vmem:[%s195 + $0x30] sm:$0xf]
        %v209 = vld [vmem:[%s195 + $0x34] sm:$0xf]
        %v210 = vld [vmem:[%s195 + $0x38] sm:$0xf]
        %v211 = vld [vmem:[%s195 + $0x3c] sm:$0xf]
        %v212 = vld [vmem:[%s195 + $0x40] sm:$0xf]
        %v213 = vld [vmem:[%s195 + $0x44] sm:$0xf]
        %v214 = vld [vmem:[%s195 + $0x48] sm:$0xf]
        %v215 = vld [vmem:[%s195 + $0x4c] sm:$0xf]
        %v216 = vld [vmem:[%s195 + $0x50] sm:$0xf]
        %v217 = vld [vmem:[%s195 + $0x54] sm:$0xf]
        %v218 = vld [vmem:[%s195 + $0x58] sm:$0xf]
        %v219 = vld [vmem:[%s195 + $0x5c] sm:$0xf]
        %v236 = vunpack.c.l.b16 %v196
        %v237 = vunpack.c.l.b16 %v197
        %v238 = vunpack.c.l.b16 %v198
        %v239 = vunpack.c.l.b16 %v199
        %v240 = vunpack.c.l.b16 %v200
        %v241 = vunpack.c.l.b16 %v201
        %v242 = vunpack.c.l.b16 %v202
        %v243 = vunpack.c.l.b16 %v203
        %v244 = vunpack.c.l.b16 %v204
        %v245 = vunpack.c.l.b16 %v205
        %v246 = vunpack.c.l.b16 %v206
        %v247 = vunpack.c.l.b16 %v207
        %v248 = vunpack.c.l.b16 %v208
        %v249 = vunpack.c.l.b16 %v209
        %v250 = vunpack.c.l.b16 %v210
        %v251 = vunpack.c.l.b16 %v211
        %v252 = vpack.c.b16 %v237, %v236
        %v253 = vpack.c.b16 %v239, %v238
        %v254 = vpack.c.b16 %v241, %v240
        %v255 = vpack.c.b16 %v243, %v242
        %v256 = vpack.c.b16 %v245, %v244
        %v257 = vpack.c.b16 %v247, %v246
        %v258 = vpack.c.b16 %v249, %v248
        %v259 = vpack.c.b16 %v251, %v250
        %v262 = vunpack.c.l.b16 %v212
        %v263 = vunpack.c.l.b16 %v213
        %v264 = vpack.c.b16 %v263, %v262
        %265 = vrot.lane.b32.xlu0 %v253, 20
        %v266 = vpop.permute.xlu0 %265
        %267 = vrot.lane.b32.xlu0 %v254, 20
        %v268 = vpop.permute.xlu0 %267
        %269 = vrot.lane.b32.xlu0 %v255, 20
        %v270 = vpop.permute.xlu0 %269
        %271 = vrot.lane.b32.xlu0 %v256, 20
        %v272 = vpop.permute.xlu0 %271
        %273 = vrot.lane.b32.xlu0 %v257, 20
        %v274 = vpop.permute.xlu0 %273
        %275 = vrot.lane.b32.xlu0 %v258, 20
        %v276 = vpop.permute.xlu0 %275
        %277 = vrot.lane.b32.xlu0 %v259, 20
        %v278 = vpop.permute.xlu0 %277
        %279 = vrot.lane.b32.xlu0 %v264, 20
        %v280 = vpop.permute.xlu0 %279
        %v283 = vunpack.c.l.b16 %v214
        %v284 = vunpack.c.l.b16 %v215
        %v285 = vpack.c.b16 %v284, %v283
        %286 = vrot.lane.b32.xlu0 %v254, 40
        %v287 = vpop.permute.xlu0 %286
        %288 = vrot.lane.b32.xlu0 %v255, 40
        %v289 = vpop.permute.xlu0 %288
        %290 = vrot.lane.b32.xlu0 %v256, 40
        %v291 = vpop.permute.xlu0 %290
        %292 = vrot.lane.b32.xlu0 %v257, 40
        %v293 = vpop.permute.xlu0 %292
        %294 = vrot.lane.b32.xlu0 %v258, 40
        %v295 = vpop.permute.xlu0 %294
        %296 = vrot.lane.b32.xlu0 %v259, 40
        %v297 = vpop.permute.xlu0 %296
        %298 = vrot.lane.b32.xlu0 %v264, 40
        %v299 = vpop.permute.xlu0 %298
        %300 = vrot.lane.b32.xlu0 %v285, 40
        %v301 = vpop.permute.xlu0 %300
        %v304 = vunpack.c.l.b16 %v216
        %v305 = vunpack.c.l.b16 %v217
        %v306 = vpack.c.b16 %v305, %v304
        %307 = vrot.lane.b32.xlu0 %v255, 60
        %v308 = vpop.permute.xlu0 %307
        %309 = vrot.lane.b32.xlu0 %v256, 60
        %v310 = vpop.permute.xlu0 %309
        %311 = vrot.lane.b32.xlu0 %v257, 60
        %v312 = vpop.permute.xlu0 %311
        %313 = vrot.lane.b32.xlu0 %v258, 60
        %v314 = vpop.permute.xlu0 %313
        %315 = vrot.lane.b32.xlu0 %v259, 60
        %v316 = vpop.permute.xlu0 %315
        %317 = vrot.lane.b32.xlu0 %v264, 60
        %v318 = vpop.permute.xlu0 %317
        %319 = vrot.lane.b32.xlu0 %v285, 60
        %v320 = vpop.permute.xlu0 %319
        %321 = vrot.lane.b32.xlu0 %v306, 60
        %v322 = vpop.permute.xlu0 %321
        %v325 = vunpack.c.l.b16 %v218
        %v326 = vunpack.c.l.b16 %v219
        %v327 = vpack.c.b16 %v326, %v325
        %328 = vrot.lane.b32.xlu0 %v256, 80
        %v329 = vpop.permute.xlu0 %328
        %330 = vrot.lane.b32.xlu0 %v257, 80
        %v331 = vpop.permute.xlu0 %330
        %332 = vrot.lane.b32.xlu0 %v258, 80
        %v333 = vpop.permute.xlu0 %332
        %334 = vrot.lane.b32.xlu0 %v259, 80
        %v335 = vpop.permute.xlu0 %334
        %336 = vrot.lane.b32.xlu0 %v264, 80
        %v337 = vpop.permute.xlu0 %336
        %338 = vrot.lane.b32.xlu0 %v285, 80
        %v339 = vpop.permute.xlu0 %338
        %340 = vrot.lane.b32.xlu0 %v306, 80
        %v341 = vpop.permute.xlu0 %340
        %342 = vrot.lane.b32.xlu0 %v327, 80
        %v343 = vpop.permute.xlu0 %342
        %vm344 = vcmask 162816
        %v347 = vsel %vm344, %v252, %v266
        %v350 = vsel %vm344, %v253, %v268
        %v353 = vsel %vm344, %v254, %v270
        %v356 = vsel %vm344, %v255, %v272
        %v359 = vsel %vm344, %v256, %v274
        %v362 = vsel %vm344, %v257, %v276
        %v365 = vsel %vm344, %v258, %v278
        %v368 = vsel %vm344, %v259, %v280
        %vm369 = vcmask 326656
        %v371 = vsel %vm369, %v347, %v287
        %v373 = vsel %vm369, %v350, %v289
        %v375 = vsel %vm369, %v353, %v291
        %v377 = vsel %vm369, %v356, %v293
        %v379 = vsel %vm369, %v359, %v295
        %v381 = vsel %vm369, %v362, %v297
        %v383 = vsel %vm369, %v365, %v299
        %v385 = vsel %vm369, %v368, %v301
        %vm386 = vcmask 490496
        %v388 = vsel %vm386, %v371, %v308
        %v390 = vsel %vm386, %v373, %v310
        %v392 = vsel %vm386, %v375, %v312
        %v394 = vsel %vm386, %v377, %v314
        %v396 = vsel %vm386, %v379, %v316
        %v398 = vsel %vm386, %v381, %v318
        %v400 = vsel %vm386, %v383, %v320
        %v402 = vsel %vm386, %v385, %v322
        %vm403 = vcmask 654336
        %v405 = vsel %vm403, %v388, %v329
        %v407 = vsel %vm403, %v390, %v331
        %v409 = vsel %vm403, %v392, %v333
        %v411 = vsel %vm403, %v394, %v335
        %v413 = vsel %vm403, %v396, %v337
        %v415 = vsel %vm403, %v398, %v339
        %v417 = vsel %vm403, %v400, %v341
        %v419 = vsel %vm403, %v402, %v343
        %v420 = vld [vmem:[#allocation5] sm:$0xf]
        %v421 = vld [vmem:[#allocation5 + $0x4] sm:$0xf]
        %v422 = vld [vmem:[#allocation5 + $0x8] sm:$0xf]
        %v423 = vld [vmem:[#allocation5 + $0xc] sm:$0xf]
        %v424 = vld [vmem:[#allocation5 + $0x10] sm:$0xf]
        %v425 = vld [vmem:[#allocation5 + $0x14] sm:$0xf]
        %v426 = vld [vmem:[#allocation5 + $0x18] sm:$0xf]
        %v427 = vld [vmem:[#allocation5 + $0x1c] sm:$0xf]
        %v428 = vld [vmem:[#allocation5 + $0x20] sm:$0xf]
        %v429 = vld [vmem:[#allocation5 + $0x24] sm:$0xf]
        %v430 = vld [vmem:[#allocation5 + $0x28] sm:$0xf]
        %v431 = vld [vmem:[#allocation5 + $0x2c] sm:$0xf]
        %v432 = vld [vmem:[#allocation5 + $0x30] sm:$0x3]
        %v446 = vunpack.c.l.b16 %v420
        %v447 = vunpack.c.l.b16 %v421
        %v448 = vunpack.c.l.b16 %v422
        %v449 = vunpack.c.l.b16 %v423
        %v450 = vunpack.c.l.b16 %v424
        %v451 = vunpack.c.l.b16 %v425
        %v452 = vunpack.c.l.b16 %v426
        %v453 = vunpack.c.l.b16 %v427
        %v454 = vunpack.c.l.b16 %v428
        %v455 = vunpack.c.l.b16 %v429
        %v456 = vunpack.c.l.b16 %v430
        %v457 = vunpack.c.l.b16 %v431
        %v458 = vunpack.c.l.b16 %v432
        %v459 = vpack.c.b16 %v447, %v446
        %v460 = vpack.c.b16 %v449, %v448
        %v461 = vpack.c.b16 %v451, %v450
        %v462 = vpack.c.b16 %v453, %v452
        %v463 = vpack.c.b16 %v455, %v454
        %v464 = vpack.c.b16 %v457, %v456
        %v465 = vpack.c.b16 %v458, %v458
        %vm472 = vcmask 818176
        %v473 = vsel %vm472, %v405, 0
        %v475 = vsel %vm472, %v407, 0
        %v477 = vsel %vm472, %v409, 0
        %v479 = vsel %vm472, %v411, 0
        %v481 = vsel %vm472, %v413, 0
        %v483 = vsel %vm472, %v415, 0
        %v485 = vsel %vm472, %v417, 0
        %v487 = vsel %vm472, %v419, 0
        %vm489 = vcmask 1041408
        %v491 = vsel %vm489, %v465, 0
        %493 = vmatprep.subr.bf16.mxu0 0
        %494 = vmatpush1.bf16.msra.mxu0 %v459
        %495 = vmatprep.subr.bf16.mxu0 0
        %496 = vmatpush1.bf16.msra.mxu0 %v460
        %497 = vmatprep.subr.bf16.mxu0 0
        %498 = vmatpush1.bf16.msra.mxu0 %v461
        %499 = vmatprep.subr.bf16.mxu0 0
        %500 = vmatpush1.bf16.msra.mxu0 %v462
        %501 = vmatprep.subr.bf16.mxu0 0
        %502 = vmatpush1.bf16.msra.mxu0 %v463
        %503 = vmatprep.subr.bf16.mxu0 0
        %504 = vmatpush1.bf16.msra.mxu0 %v464
        %505 = vmatprep.subr.bf16.mxu0 0
        %506 = vmatpush1.bf16.msra.mxu0 %v491
        %507 = vmatprep.subr.bf16.mxu0 0
        %508 = vmatpush1.bf16.msra.mxu0 0
        %509 = vmatprep.subr.bf16.mxu0 0
        %510 = vmatpush1.bf16.msra.mxu0 0
        %511 = vmatprep.subr.bf16.mxu0 0
        %512 = vmatpush1.bf16.msra.mxu0 0
        %513 = vmatprep.subr.bf16.mxu0 0
        %514 = vmatpush1.bf16.msra.mxu0 0
        %515 = vmatprep.subr.bf16.mxu0 0
        %516 = vmatpush1.bf16.msra.mxu0 0
        %517 = vmatprep.subr.bf16.mxu0 0
        %518 = vmatpush1.bf16.msra.mxu0 0
        %519 = vmatprep.subr.bf16.mxu0 0
        %520 = vmatpush1.bf16.msra.mxu0 0
        %521 = vmatprep.subr.bf16.mxu0 0
        %522 = vmatpush1.bf16.msra.mxu0 0
        %523 = vmatprep.subr.bf16.mxu0 0
        %524 = vmatpush1.bf16.msra.mxu0 0
        %525 = vmatprep.mubr.bf16.mxu0 0
        %526 = vmatmul.mubr.bf16.gmra.mrb[0].mxu0 %v473
        %v527 = vpop.f32.mrb[0].mxu0
        %v528 = vadd.f32 0.0, %v527
        %v529 = vpop.f32.mrb[0].mxu0
        %v530 = vpop.f32.mrb[0].mxu0
        %v531 = vadd.f32 0.0, %v530
        %v532 = vpop.f32.mrb[0].mxu0
        %533 = vmatprep.mubr.bf16.mxu0 0
        %534 = vmatmul.mubr.bf16.gmra.mrb[0].mxu0 %v475
        %v535 = vpop.f32.mrb[0].mxu0
        %v536 = vadd.f32 0.0, %v535
        %v537 = vpop.f32.mrb[0].mxu0
        %v538 = vpop.f32.mrb[0].mxu0
        %v539 = vadd.f32 0.0, %v538
        %v540 = vpop.f32.mrb[0].mxu0
        %541 = vmatprep.mubr.bf16.mxu0 0
        %542 = vmatmul.mubr.bf16.gmra.mrb[0].mxu0 %v477
        %v543 = vpop.f32.mrb[0].mxu0
        %v544 = vadd.f32 0.0, %v543
        %v545 = vpop.f32.mrb[0].mxu0
        %v546 = vpop.f32.mrb[0].mxu0
        %v547 = vadd.f32 0.0, %v546
        %v548 = vpop.f32.mrb[0].mxu0
        %549 = vmatprep.mubr.bf16.mxu0 0
        %550 = vmatmul.mubr.bf16.gmra.mrb[0].mxu0 %v479
        %v551 = vpop.f32.mrb[0].mxu0
        %v552 = vadd.f32 0.0, %v551
        %v553 = vpop.f32.mrb[0].mxu0
        %v554 = vpop.f32.mrb[0].mxu0
        %v555 = vadd.f32 0.0, %v554
        %v556 = vpop.f32.mrb[0].mxu0
        %557 = vmatprep.mubr.bf16.mxu0 0
        %558 = vmatmul.mubr.bf16.gmra.mrb[0].mxu0 %v481
        %v559 = vpop.f32.mrb[0].mxu0
        %v560 = vadd.f32 0.0, %v559
        %v561 = vpop.f32.mrb[0].mxu0
        %v562 = vpop.f32.mrb[0].mxu0
        %v563 = vadd.f32 0.0, %v562
        %v564 = vpop.f32.mrb[0].mxu0
        %565 = vmatprep.mubr.bf16.mxu0 0
        %566 = vmatmul.mubr.bf16.gmra.mrb[0].mxu0 %v483
        %v567 = vpop.f32.mrb[0].mxu0
        %v568 = vadd.f32 0.0, %v567
        %v569 = vpop.f32.mrb[0].mxu0
        %v570 = vpop.f32.mrb[0].mxu0
        %v571 = vadd.f32 0.0, %v570
        %v572 = vpop.f32.mrb[0].mxu0
        %573 = vmatprep.mubr.bf16.mxu0 0
        %574 = vmatmul.mubr.bf16.gmra.mrb[0].mxu0 %v485
        %v575 = vpop.f32.mrb[0].mxu0
        %v576 = vadd.f32 0.0, %v575
        %v577 = vpop.f32.mrb[0].mxu0
        %v578 = vpop.f32.mrb[0].mxu0
        %v579 = vadd.f32 0.0, %v578
        %v580 = vpop.f32.mrb[0].mxu0
        %581 = vmatprep.mubr.bf16.mxu0 0
        %582 = vmatmul.mubr.bf16.gmra.mrb[0].mxu0 %v487
        %v583 = vpop.f32.mrb[0].mxu0
        %v584 = vadd.f32 0.0, %v583
        %v585 = vpop.f32.mrb[0].mxu0
        %v586 = vpop.f32.mrb[0].mxu0
        %v587 = vadd.f32 0.0, %v586
        %v588 = vpop.f32.mrb[0].mxu0
        %589 = vdwg.mxu0
        %v590 = vadd.f32 %v528, %v531
        %v591 = vadd.f32 %v590, %v536
        %v592 = vadd.f32 %v591, %v539
        %v593 = vadd.f32 %v592, %v544
        %v594 = vadd.f32 %v593, %v547
        %v595 = vadd.f32 %v594, %v552
        %v596 = vadd.f32 %v595, %v555
        %v597 = vadd.f32 %v596, %v560
        %v598 = vadd.f32 %v597, %v563
        %v599 = vadd.f32 %v598, %v568
        %v600 = vadd.f32 %v599, %v571
        %v601 = vadd.f32 %v600, %v576
        %v602 = vadd.f32 %v601, %v579
        %v603 = vadd.f32 %v602, %v584
        %v604 = vadd.f32 %v603, %v587
        %v605 = vrot.slane %v604, 4
        %v606 = vadd.f32 %v604, %v605
        %v607 = vrot.slane %v606, 2
        %v608 = vadd.f32 %v606, %v607
        %v609 = vrot.slane %v608, 1
        %v610 = vadd.f32 %v608, %v609
        %v611 = vmul.f32 %v528, %v528
        %v612 = vmul.f32 %v531, %v531
        %v613 = vmul.f32 %v536, %v536
        %v614 = vmul.f32 %v539, %v539
        %v615 = vmul.f32 %v544, %v544
        %v616 = vmul.f32 %v547, %v547
        %v617 = vmul.f32 %v552, %v552
        %v618 = vmul.f32 %v555, %v555
        %v619 = vmul.f32 %v560, %v560
        %v620 = vmul.f32 %v563, %v563
        %v621 = vmul.f32 %v568, %v568
        %v622 = vmul.f32 %v571, %v571
        %v623 = vmul.f32 %v576, %v576
        %v624 = vmul.f32 %v579, %v579
        %v625 = vmul.f32 %v584, %v584
        %v626 = vmul.f32 %v587, %v587
        %v627 = vadd.f32 %v611, %v612
        %v628 = vadd.f32 %v627, %v613
        %v629 = vadd.f32 %v628, %v614
        %v630 = vadd.f32 %v629, %v615
        %v631 = vadd.f32 %v630, %v616
        %v632 = vadd.f32 %v631, %v617
        %v633 = vadd.f32 %v632, %v618
        %v634 = vadd.f32 %v633, %v619
        %v635 = vadd.f32 %v634, %v620
        %v636 = vadd.f32 %v635, %v621
        %v637 = vadd.f32 %v636, %v622
        %v638 = vadd.f32 %v637, %v623
        %v639 = vadd.f32 %v638, %v624
        %v640 = vadd.f32 %v639, %v625
        %v641 = vadd.f32 %v640, %v626
        %v642 = vrot.slane %v641, 4
        %v643 = vadd.f32 %v641, %v642
        %v644 = vrot.slane %v643, 2
        %v645 = vadd.f32 %v643, %v644
        %v646 = vrot.slane %v645, 1
        %v647 = vadd.f32 %v645, %v646
        %vm648 = vcmask 1040384
        %v649 = vsel %vm648, %v610, %v647
        %650 = vst [vmem:[%s190] sm:$0x3] %v649
        %s651 = sand.u32 %s89, 1
        %s652 = scalar_lea.sflag [#allocation4], %s651
        %s653 = sand.u32 %s89, 1
        %s654 = smul.addr %s653, 2
        %s655 = scalar_lea.vmem [#allocation7], %s654
        // Predicated region
        $region37: #{tpu_custom_call.1} parent=27 // pred_check
          %p656 = pneg %p99
        $region38: #{tpu_custom_call.1} parent=27 // pred_check_branch
          %658 = sbr.rel (%p656) target = $region40
        $region39: #{tpu_custom_call.1} parent=27 // pred_region
          %s660 = ssub.s32 32, 32
          %661 = vsyncadd %s652, %s660
          %s662 = smul.addr %s24, 2
          %s663 = sadd.s32 %s25, %s662
          %s664 = smul.addr %s663, 32
          %s665 = scalar_lea.hbm %s2, %s664
          %s667 = sshll.u32 %s655, 4
          %s668 = int_to_ptr.vmem [resolvable:$true] %s667
          %670 = dma.vmem_to_hbm [thread:$0]  %s668, 32, %s665, %s652
        $region40: #{tpu_custom_call.1} parent=27 // pred_fallthru
          _
      $region28: #{tpu_custom_call.1} parent=5 // pred_fallthru
        _
      %p671 = scmp.le.s32.totalorder 2, %s15
      // Predicated region
      $region41: #{tpu_custom_call.1} parent=5 // pred_check
        %p672 = pneg %p671
      $region42: #{tpu_custom_call.1} parent=5 // pred_check_branch
        %674 = sbr.rel (%p672) target = $region44
      $region43: #{tpu_custom_call.1} parent=5 // pred_region
        %s675 = ssub.s32 %s15, 2
        // Predicated region
        $region45: #{tpu_custom_call.1} parent=43 // pred_check
          %p676 = pneg %p105
        $region46: #{tpu_custom_call.1} parent=43 // pred_check_branch
          %678 = sbr.rel (%p676) target = $region48
        $region47: #{tpu_custom_call.1} parent=43 // pred_region
          %s679 = sand.u32 %s90, 1
          %s680 = scalar_lea.sflag [#allocation4], %s679
          %s681 = sand.u32 %s90, 1
          %s682 = smul.addr %s681, 2
          %s683 = scalar_lea.vmem [#allocation7], %s682
          %684 = dma.done %s680, 32
        $region48: #{tpu_custom_call.1} parent=43 // pred_fallthru
          _
      $region44: #{tpu_custom_call.1} parent=5 // pred_fallthru
        _
    $region6: #{tpu_custom_call.1} parent=1 // loop_footer
      %s19 = sadd.s32 1, %s15
    $region7: #{tpu_custom_call.1} parent=1 // loop_footer_branch
      %14 = sbr.rel target = $region3
    $region8: #{tpu_custom_call.1} parent=1 // loop_exit
      _
    %685 = vsyncpa [#allocation3], 1
    %s686 = scalar_lea.sflag [#allocation3], 1
    %687 = vsyncpa %s686, 1
    %688 = vsyncpa [#allocation6], 1
    %689 = vsyncpa [#allocation4], 1
    %s690 = scalar_lea.sflag [#allocation4], 1
    %691 = vsyncpa %s690, 1

</llo_original>
